<compile_context>
chip_gen: v7x
topology: tpu7x:2x2x1
jax: 0.10.0
libtpu: 0.0.40
codegen_flags: <defaults>
</compile_context>

<pallas_src>
import functools

import jax
import jax.numpy as jnp
from jax.experimental import pallas as pl
from jax.experimental.pallas import tpu as pltpu

SMOOTH = 1e-6
LANES = 128
BLOCK_ROWS = 4096          # (4096, 128) f32 block = 2 MiB
SLAB_ROWS = 64             # rows per inner-loop step (8 vregs/f32 array)
_CHUNK = 8 * LANES         # 1024: granularity handled by the kernel


def _dice_partial_kernel(x_ref, t_ref, o_ref, acc_inter, acc_sum, *,
                         rows, nblocks, steps, block_rows, slab_rows,
                         have_phantom, last_partial):
    """Per-core partial sums of sigmoid(x)*t and sigmoid(x)+t (per-lane)."""
    p = pl.program_id(0)          # TensorCore split axis ("parallel")
    k = pl.program_id(1)          # sequential streaming axis ("arbitrary")
    gbid = p * steps + k          # global block id along the row axis

    @pl.when(k == 0)
    def _():
        acc_inter[...] = jnp.zeros_like(acc_inter)
        acc_sum[...] = jnp.zeros_like(acc_sum)

    n_slabs = block_rows // slab_rows
    folds = slab_rows // 8

    def make_slab_body(masked):
        def body(j, carry):
            r0 = pl.multiple_of(j * slab_rows, slab_rows)
            xs = jax.nn.sigmoid(
                x_ref[pl.ds(r0, slab_rows), :].astype(jnp.float32))
            ts = t_ref[pl.ds(r0, slab_rows), :].astype(jnp.float32)
            if masked:
                # Row-granular validity mask; traced only for the last valid
                # block.  Keep the jnp.where: OOB buffer contents may be
                # arbitrary (even NaN), so a multiply-by-0/1 mask is unsafe.
                grow = (gbid * block_rows + r0
                        + jax.lax.broadcasted_iota(
                            jnp.int32, (slab_rows, LANES), 0))
                valid = grow < rows
                zero = jnp.float32(0.0)
                xs = jnp.where(valid, xs, zero)
                ts = jnp.where(valid, ts, zero)
            # Fold (slab, 128) -> (slab/8, 8, 128) and reduce the leading
            # axis: pure vreg+vreg adds; defer the expensive cross-lane
            # reduce to the wrapper epilogue.
            acc_inter[...] += jnp.sum((xs * ts).reshape(folds, 8, LANES), axis=0)
            acc_sum[...] += jnp.sum((xs + ts).reshape(folds, 8, LANES), axis=0)
            return carry
        return body

    def run(masked):
        jax.lax.fori_loop(0, n_slabs, make_slab_body(masked), 0,
                          unroll=min(8, n_slabs))

    is_last_valid = gbid == (nblocks - 1)
    if last_partial:
        not_last = jnp.logical_not(is_last_valid)
        if have_phantom:
            not_last = jnp.logical_and(gbid < nblocks, not_last)

        @pl.when(not_last)
        def _():
            run(False)

        @pl.when(is_last_valid)
        def _():
            run(True)
    else:
        if have_phantom:
            @pl.when(gbid < nblocks)
            def _():
                run(False)
        else:
            run(False)

    @pl.when(k == pl.num_programs(1) - 1)
    def _():
        o_ref[0, 0, :, :] = acc_inter[...]
        o_ref[0, 1, :, :] = acc_sum[...]


def dice_loss(inputs, targets, smooth=SMOOTH, block_rows=BLOCK_ROWS):
    """Pallas TPU DiceLoss.  `inputs` are pre-sigmoid logits (any shape, any
    float dtype), `targets` has the same number of elements (bf16/int8 binary
    masks welcome).  Returns a float32 scalar."""
    x = jnp.ravel(inputs)
    t = jnp.ravel(targets)
    n = x.shape[0]
    assert t.shape[0] == n, "inputs/targets must have the same element count"
    # Row-based mask indices are int32: valid for < 2**31 * 128 elements.

    n_main = n - (n % _CHUNK)
    rows = n_main // LANES

    inter = jnp.float32(0.0)
    denom = jnp.float32(0.0)

    if rows > 0:
        # Zero-copy in the common case (n % 1024 == 0); otherwise the prefix
        # slice may materialize one copy of the prefix.
        # TODO(synk): a fully copy-free ragged path needs 1-D input blocks
        # (reshape-in-kernel); verify relayout cost with pl.lower_as_mlir.
        if n_main == n:
            x2 = x.reshape(rows, LANES)
            t2 = t.reshape(rows, LANES)
        else:
            x2 = x[:n_main].reshape(rows, LANES)
            t2 = t[:n_main].reshape(rows, LANES)

        br = max(8, (min(int(block_rows), rows) // 8) * 8)
        nblocks = pl.cdiv(rows, br)
        split = 2 if nblocks >= 2 else 1       # v7x: one half per TensorCore
        steps = pl.cdiv(nblocks, split)
        have_phantom = split * steps > nblocks
        last_partial = (rows % br) != 0
        slab = SLAB_ROWS if br % SLAB_ROWS == 0 else 8

        def in_map(p, k):
            b = p * steps + k
            if have_phantom:
                b = jnp.minimum(b, nblocks - 1)   # clamp the phantom block
            return (b, 0)

        kernel = functools.partial(
            _dice_partial_kernel,
            rows=rows, nblocks=nblocks, steps=steps, block_rows=br,
            slab_rows=slab, have_phantom=have_phantom,
            last_partial=last_partial)

        parts = pl.pallas_call(
            kernel,
            out_shape=jax.ShapeDtypeStruct((split, 2, 8, LANES), jnp.float32),
            grid=(split, steps),
            in_specs=[
                pl.BlockSpec((br, LANES), in_map),
                pl.BlockSpec((br, LANES), in_map),
            ],
            out_specs=pl.BlockSpec((1, 2, 8, LANES),
                                   lambda p, k: (p, 0, 0, 0)),
            scratch_shapes=[
                pltpu.VMEM((8, LANES), jnp.float32),   # sum(sigmoid(x) * t)
                pltpu.VMEM((8, LANES), jnp.float32),   # sum(sigmoid(x) + t)
            ],
            compiler_params=pltpu.CompilerParams(
                dimension_semantics=("parallel", "arbitrary")),
        )(x2, t2)

        inter = inter + jnp.sum(parts[:, 0])
        denom = denom + jnp.sum(parts[:, 1])

    if n_main != n:
        # Ragged tail (< 1024 elements): fold in with plain jnp (no pad copy).
        xt = jax.nn.sigmoid(x[n_main:].astype(jnp.float32))
        tt = t[n_main:].astype(jnp.float32)
        inter = inter + jnp.sum(xt * tt)
        denom = denom + jnp.sum(xt) + jnp.sum(tt)

    dice = (2.0 * inter + jnp.float32(smooth)) / (denom + jnp.float32(smooth))
    return jnp.float32(1.0) - dice


def dice_loss_ref(inputs, targets, smooth=SMOOTH):
    x = jax.nn.sigmoid(jnp.ravel(inputs).astype(jnp.float32))
    t = jnp.ravel(targets).astype(jnp.float32)
    inter = jnp.sum(x * t)
    dice = (2.0 * inter + smooth) / (jnp.sum(x) + jnp.sum(t) + smooth)
    return 1.0 - dice


if __name__ == "__main__":
    key = jax.random.PRNGKey(0)

    # (shape, dtype, block_rows override). The block_rows override lets small
    # test shapes exercise the multi-block / 2-core-split / phantom-block /
    # masked-last-block paths that large production tensors would hit.
    cases = [
        ((2, 4, 16, 16), jnp.float32, BLOCK_ROWS),   # spec shape: 1 block
        ((3, 5, 7, 11), jnp.float32, BLOCK_ROWS),    # ragged tail (1155 elems)
        ((2, 4, 128, 160), jnp.float32, 512),        # multi-block + split +
                                                     # phantom + masked last
        ((2, 4, 64, 64), jnp.bfloat16, BLOCK_ROWS),  # bf16 streaming
    ]

    for shape, dtype, br in cases:
        key, k1, k2 = jax.random.split(key, 3)
        logits = jax.random.normal(k1, shape, dtype=jnp.float32).astype(dtype)
        masks = (jax.random.uniform(k2, shape) > 0.5).astype(dtype)

        loss = jax.block_until_ready(dice_loss(logits, masks, block_rows=br))
        ref = jax.block_until_ready(dice_loss_ref(logits, masks))
        assert jnp.allclose(loss, ref, atol=5e-5, rtol=5e-5), (
            shape, dtype, loss, ref)

    print("KERNEL_OK")
</pallas_src>

<mosaic_0001>
module attributes {stable_mosaic.version = 11 : i64} {
  func.func @_dice_partial_kernel(%arg0: i32, %arg1: i32, %arg2: memref<16x128xf32, #tpu.memory_space<vmem>>, %arg3: memref<16x128xf32, #tpu.memory_space<vmem>>, %arg4: memref<1x2x8x128xf32, #tpu.memory_space<vmem>>, %arg5: memref<8x128xf32, #tpu.memory_space<vmem>>, %arg6: memref<8x128xf32, #tpu.memory_space<vmem>>) attributes {dimension_semantics = [#tpu.dimension_semantics<parallel>, #tpu.dimension_semantics<arbitrary>], iteration_bounds = array<i64: 1, 1>, scalar_prefetch = 0 : i64, scratch_operands = 2 : i64, tpu.core_type = #tpu.core_type<tc>, window_params = [{transform_indices = @transform_0, window_bounds = array<i64: 16, 128>}, {transform_indices = @transform_1, window_bounds = array<i64: 16, 128>}, {transform_indices = @transform_2, window_bounds = array<i64: 1, 2, 8, 128>}]} {
    %c0_i32 = arith.constant 0 : i32
    %0 = arith.cmpi eq, %arg1, %c0_i32 : i32
    %1 = arith.extui %0 : i1 to i32
    %c0_i32_0 = arith.constant 0 : i32
    %2 = arith.cmpi ne, %1, %c0_i32_0 : i32
    scf.if %2 {
      %cst_29 = arith.constant 0.000000e+00 : f32
      %52 = vector.broadcast %cst_29 : f32 to vector<8x128xf32>
      %c0_30 = arith.constant 0 : index
      %c0_31 = arith.constant 0 : index
      %53 = vector.load %arg5[%c0_30, %c0_31] : memref<8x128xf32, #tpu.memory_space<vmem>>, vector<8x128xf32>
      tpu.vector_store %arg5[%c0_30, %c0_31], %52 {strides = array<i32>} : memref<8x128xf32, #tpu.memory_space<vmem>>, vector<8x128xf32>,
      %cst_32 = arith.constant 0.000000e+00 : f32
      %54 = vector.broadcast %cst_32 : f32 to vector<8x128xf32>
      %c0_33 = arith.constant 0 : index
      %c0_34 = arith.constant 0 : index
      %55 = vector.load %arg6[%c0_33, %c0_34] : memref<8x128xf32, #tpu.memory_space<vmem>>, vector<8x128xf32>
      tpu.vector_store %arg6[%c0_33, %c0_34], %54 {strides = array<i32>} : memref<8x128xf32, #tpu.memory_space<vmem>>, vector<8x128xf32>,
    } else {
    }
    %c0_i32_1 = arith.constant 0 : i32
    %c8_i32 = arith.constant 8 : i32
    %3 = arith.muli %c0_i32_1, %c8_i32 : i32
    %4 = tpu.assume_multiple %3, 8 : i32
    %5 = arith.index_cast %4 : i32 to index
    %c0 = arith.constant 0 : index
    %6 = vector.load %arg2[%5, %c0] : memref<16x128xf32, #tpu.memory_space<vmem>>, vector<8x128xf32>
    %7 = arith.negf %6 : vector<8x128xf32>
    %8 = math.exp %7 : vector<8x128xf32>
    %cst = arith.constant 1.000000e+00 : f32
    %9 = vector.broadcast %cst : f32 to vector<8x128xf32>
    %10 = arith.addf %9, %8 : vector<8x128xf32>
    %11 = arith.divf %9, %10 : vector<8x128xf32>
    %12 = arith.index_cast %4 : i32 to index
    %c0_2 = arith.constant 0 : index
    %13 = vector.load %arg3[%12, %c0_2] : memref<16x128xf32, #tpu.memory_space<vmem>>, vector<8x128xf32>
    %c0_3 = arith.constant 0 : index
    %c0_4 = arith.constant 0 : index
    %14 = vector.load %arg5[%c0_3, %c0_4] : memref<8x128xf32, #tpu.memory_space<vmem>>, vector<8x128xf32>
    %15 = arith.mulf %11, %13 : vector<8x128xf32>
    %16 = vector.shape_cast %15 : vector<8x128xf32> to vector<1x8x128xf32>
    %cst_5 = arith.constant dense<0.000000e+00> : vector<8x128xf32>
    %17 = vector.multi_reduction <add>, %16, %cst_5 [0] : vector<1x8x128xf32> to vector<8x128xf32>
    %18 = arith.addf %14, %17 : vector<8x128xf32>
    %c0_6 = arith.constant 0 : index
    %c0_7 = arith.constant 0 : index
    %19 = vector.load %arg5[%c0_6, %c0_7] : memref<8x128xf32, #tpu.memory_space<vmem>>, vector<8x128xf32>
    tpu.vector_store %arg5[%c0_6, %c0_7], %18 {strides = array<i32>} : memref<8x128xf32, #tpu.memory_space<vmem>>, vector<8x128xf32>,
    %c0_8 = arith.constant 0 : index
    %c0_9 = arith.constant 0 : index
    %20 = vector.load %arg6[%c0_8, %c0_9] : memref<8x128xf32, #tpu.memory_space<vmem>>, vector<8x128xf32>
    %21 = arith.addf %11, %13 : vector<8x128xf32>
    %22 = vector.shape_cast %21 : vector<8x128xf32> to vector<1x8x128xf32>
    %cst_10 = arith.constant dense<0.000000e+00> : vector<8x128xf32>
    %23 = vector.multi_reduction <add>, %22, %cst_10 [0] : vector<1x8x128xf32> to vector<8x128xf32>
    %24 = arith.addf %20, %23 : vector<8x128xf32>
    %c0_11 = arith.constant 0 : index
    %c0_12 = arith.constant 0 : index
    %25 = vector.load %arg6[%c0_11, %c0_12] : memref<8x128xf32, #tpu.memory_space<vmem>>, vector<8x128xf32>
    tpu.vector_store %arg6[%c0_11, %c0_12], %24 {strides = array<i32>} : memref<8x128xf32, #tpu.memory_space<vmem>>, vector<8x128xf32>,
    %c1_i32 = arith.constant 1 : i32
    %c8_i32_13 = arith.constant 8 : i32
    %26 = arith.muli %c1_i32, %c8_i32_13 : i32
    %27 = tpu.assume_multiple %26, 8 : i32
    %28 = arith.index_cast %27 : i32 to index
    %c0_14 = arith.constant 0 : index
    %29 = vector.load %arg2[%28, %c0_14] : memref<16x128xf32, #tpu.memory_space<vmem>>, vector<8x128xf32>
    %30 = arith.negf %29 : vector<8x128xf32>
    %31 = math.exp %30 : vector<8x128xf32>
    %cst_15 = arith.constant 1.000000e+00 : f32
    %32 = vector.broadcast %cst_15 : f32 to vector<8x128xf32>
    %33 = arith.addf %32, %31 : vector<8x128xf32>
    %34 = arith.divf %32, %33 : vector<8x128xf32>
    %35 = arith.index_cast %27 : i32 to index
    %c0_16 = arith.constant 0 : index
    %36 = vector.load %arg3[%35, %c0_16] : memref<16x128xf32, #tpu.memory_space<vmem>>, vector<8x128xf32>
    %c0_17 = arith.constant 0 : index
    %c0_18 = arith.constant 0 : index
    %37 = vector.load %arg5[%c0_17, %c0_18] : memref<8x128xf32, #tpu.memory_space<vmem>>, vector<8x128xf32>
    %38 = arith.mulf %34, %36 : vector<8x128xf32>
    %39 = vector.shape_cast %38 : vector<8x128xf32> to vector<1x8x128xf32>
    %cst_19 = arith.constant dense<0.000000e+00> : vector<8x128xf32>
    %40 = vector.multi_reduction <add>, %39, %cst_19 [0] : vector<1x8x128xf32> to vector<8x128xf32>
    %41 = arith.addf %37, %40 : vector<8x128xf32>
    %c0_20 = arith.constant 0 : index
    %c0_21 = arith.constant 0 : index
    %42 = vector.load %arg5[%c0_20, %c0_21] : memref<8x128xf32, #tpu.memory_space<vmem>>, vector<8x128xf32>
    tpu.vector_store %arg5[%c0_20, %c0_21], %41 {strides = array<i32>} : memref<8x128xf32, #tpu.memory_space<vmem>>, vector<8x128xf32>,
    %c0_22 = arith.constant 0 : index
    %c0_23 = arith.constant 0 : index
    %43 = vector.load %arg6[%c0_22, %c0_23] : memref<8x128xf32, #tpu.memory_space<vmem>>, vector<8x128xf32>
    %44 = arith.addf %34, %36 : vector<8x128xf32>
    %45 = vector.shape_cast %44 : vector<8x128xf32> to vector<1x8x128xf32>
    %cst_24 = arith.constant dense<0.000000e+00> : vector<8x128xf32>
    %46 = vector.multi_reduction <add>, %45, %cst_24 [0] : vector<1x8x128xf32> to vector<8x128xf32>
    %47 = arith.addf %43, %46 : vector<8x128xf32>
    %c0_25 = arith.constant 0 : index
    %c0_26 = arith.constant 0 : index
    %48 = vector.load %arg6[%c0_25, %c0_26] : memref<8x128xf32, #tpu.memory_space<vmem>>, vector<8x128xf32>
    tpu.vector_store %arg6[%c0_25, %c0_26], %47 {strides = array<i32>} : memref<8x128xf32, #tpu.memory_space<vmem>>, vector<8x128xf32>,
    %c2_i32 = arith.constant 2 : i32
    %c0_i32_27 = arith.constant 0 : i32
    %49 = arith.cmpi eq, %arg1, %c0_i32_27 : i32
    %50 = arith.extui %49 : i1 to i32
    %c0_i32_28 = arith.constant 0 : i32
    %51 = arith.cmpi ne, %50, %c0_i32_28 : i32
    scf.if %51 {
      %c0_29 = arith.constant 0 : index
      %c0_30 = arith.constant 0 : index
      %52 = vector.load %arg5[%c0_29, %c0_30] : memref<8x128xf32, #tpu.memory_space<vmem>>, vector<8x128xf32>
      %c0_31 = arith.constant 0 : index
      %c0_32 = arith.constant 0 : index
      %c0_33 = arith.constant 0 : index
      %c0_34 = arith.constant 0 : index
      %53 = vector.load %arg4[%c0_31, %c0_32, %c0_33, %c0_34] : memref<1x2x8x128xf32, #tpu.memory_space<vmem>>, vector<1x1x8x128xf32>
      %54 = vector.shape_cast %53 : vector<1x1x8x128xf32> to vector<8x128xf32>
      %55 = vector.shape_cast %52 : vector<8x128xf32> to vector<1x1x8x128xf32>
      tpu.vector_store %arg4[%c0_31, %c0_32, %c0_33, %c0_34], %55 {strides = array<i32>} : memref<1x2x8x128xf32, #tpu.memory_space<vmem>>, vector<1x1x8x128xf32>,
      %c0_35 = arith.constant 0 : index
      %c0_36 = arith.constant 0 : index
      %56 = vector.load %arg6[%c0_35, %c0_36] : memref<8x128xf32, #tpu.memory_space<vmem>>, vector<8x128xf32>
      %c0_37 = arith.constant 0 : index
      %c1 = arith.constant 1 : index
      %c0_38 = arith.constant 0 : index
      %c0_39 = arith.constant 0 : index
      %57 = vector.load %arg4[%c0_37, %c1, %c0_38, %c0_39] : memref<1x2x8x128xf32, #tpu.memory_space<vmem>>, vector<1x1x8x128xf32>
      %58 = vector.shape_cast %57 : vector<1x1x8x128xf32> to vector<8x128xf32>
      %59 = vector.shape_cast %56 : vector<8x128xf32> to vector<1x1x8x128xf32>
      tpu.vector_store %arg4[%c0_37, %c1, %c0_38, %c0_39], %59 {strides = array<i32>} : memref<1x2x8x128xf32, #tpu.memory_space<vmem>>, vector<1x1x8x128xf32>,
    } else {
    }
    return
  }
  func.func @transform_0(%arg0: i32, %arg1: i32) -> (i32, i32) {
    %c1_i32 = arith.constant 1 : i32
    %0 = arith.muli %arg0, %c1_i32 : i32
    %1 = arith.addi %0, %arg1 : i32
    %c0_i32 = arith.constant 0 : i32
    %c0_i32_0 = arith.constant 0 : i32
    return %1, %c0_i32 : i32, i32
  }
  func.func @transform_1(%arg0: i32, %arg1: i32) -> (i32, i32) {
    %c1_i32 = arith.constant 1 : i32
    %0 = arith.muli %arg0, %c1_i32 : i32
    %1 = arith.addi %0, %arg1 : i32
    %c0_i32 = arith.constant 0 : i32
    %c0_i32_0 = arith.constant 0 : i32
    return %1, %c0_i32 : i32, i32
  }
  func.func @transform_2(%arg0: i32, %arg1: i32) -> (i32, i32, i32, i32) {
    %c0_i32 = arith.constant 0 : i32
    %c0_i32_0 = arith.constant 0 : i32
    %c0_i32_1 = arith.constant 0 : i32
    %c0_i32_2 = arith.constant 0 : i32
    return %arg0, %c0_i32, %c0_i32_0, %c0_i32_1 : i32, i32, i32, i32
  }
}

</mosaic_0001>

<llo_original>
// kernel: tpu_custom_call.1
$region0: #{tpu_custom_call.1}
  #allocation0 [shape = 'u32[]', space=smem, size = 0x4, offset = 0x4, fixed_abs, tag = 'smem constant byte address 0x4 - core index']
  #allocation1 [shape = 'u32[144,128]{1,0:T(1,128)}', space=vmem, size = 0x12000, scoped, tag = 'internal scratch']
  #allocation2 [shape = 'f32[8,128]{1,0:T(8,128)}', space=vmem, size = 0x1000, scoped, tag = 'scratch operand']
  #allocation3 [shape = 'f32[8,128]{1,0:T(8,128)}', space=vmem, size = 0x1000, scoped, tag = 'scratch operand']
  %s0 = inlined_call_operand.hbm [shape: f32[16,128], index: 0, kind: input, shape index: {}]
  %s1 = inlined_call_operand.hbm [shape: f32[16,128], index: 1, kind: input, shape index: {}]
  %s2 = inlined_call_operand.hbm [shape: f32[1,2,8,128], index: 2, kind: output, shape index: {}]
  %s3 = sld [smem:[#allocation0]]
  $region34: #{tpu_custom_call.1} parent=0
    _
  %s5 = ssub.s32 1, %s3
  %s6 = scalar_select 0, %s5, %s3
  $region1: #{tpu_custom_call.1} parent=0
    #allocation4 [shape = 'u8[8192]{0}', space=vmem, size = 0x2000, scoped, tag = 'input window, operand 0, single buffered']
    #allocation5 [shape = 's32[1]{0}', space=sflag, size = 0x4, scoped, tag = 'scoped memory for tpu_custom_call.1']
    #allocation6 [shape = 's32[1]{0}', space=sflag, size = 0x4, scoped, tag = 'scoped memory for tpu_custom_call.1']
    #allocation7 [shape = 'u8[8192]{0}', space=vmem, size = 0x2000, scoped, tag = 'input window, operand 1, single buffered']
    #allocation8 [shape = 's32[1]{0}', space=sflag, size = 0x4, scoped, tag = 'scoped memory for tpu_custom_call.1']
    #allocation9 [shape = 'u8[8192]{0}', space=vmem, size = 0x2000, scoped, tag = 'output window, operand 0, single buffered']
    %7 = vsyncpa [#allocation5], 0
    %8 = vsyncpa [#allocation8], 0
    %9 = vsyncpa [#allocation6], 0
    // Predicated region
    $region2: #{tpu_custom_call.1} parent=1 // pred_check
      _
    $region3: #{tpu_custom_call.1} parent=1 // pred_check_branch
      %11 = sbr.rel (0) target = $region5
    $region4: #{tpu_custom_call.1} parent=1 // pred_region
      %s12 = sadd.s32 0, 0
      %s13 = smul.u32 2, %s12
      %s15 = ssub.s32 256, 256
      %16 = vsyncadd [#allocation5], %s15
      %s17 = smul.addr %s13, 128
      %s18 = scalar_lea.hbm %s0, %s17
      %s19 = sshll.u32 [#allocation4], 4
      %s20 = int_to_ptr.vmem [resolvable:$true] %s19
      %25 = dma.hbm_to_vmem [thread:$0]  %s18, 256, %s20, [#allocation5], 128, 128, 8
    $region5: #{tpu_custom_call.1} parent=1 // pred_fallthru
      _
    // Predicated region
    $region6: #{tpu_custom_call.1} parent=1 // pred_check
      _
    $region7: #{tpu_custom_call.1} parent=1 // pred_check_branch
      %27 = sbr.rel (0) target = $region9
    $region8: #{tpu_custom_call.1} parent=1 // pred_region
      %s28 = sadd.s32 0, 0
      %s29 = smul.u32 2, %s28
      %s31 = ssub.s32 256, 256
      %32 = vsyncadd [#allocation8], %s31
      %s33 = smul.addr %s29, 128
      %s34 = scalar_lea.hbm %s1, %s33
      %s35 = sshll.u32 [#allocation7], 4
      %s36 = int_to_ptr.vmem [resolvable:$true] %s35
      %41 = dma.hbm_to_vmem [thread:$0]  %s34, 256, %s36, [#allocation8], 128, 128, 8
    $region9: #{tpu_custom_call.1} parent=1 // pred_fallthru
      _
    // Predicated region
    $region10: #{tpu_custom_call.1} parent=1 // pred_check
      _
    $region11: #{tpu_custom_call.1} parent=1 // pred_check_branch
      %43 = sbr.rel (0) target = $region13
    $region12: #{tpu_custom_call.1} parent=1 // pred_region
      %44 = dma.done [#allocation5], 256
    $region13: #{tpu_custom_call.1} parent=1 // pred_fallthru
      _
    // Predicated region
    $region14: #{tpu_custom_call.1} parent=1 // pred_check
      _
    $region15: #{tpu_custom_call.1} parent=1 // pred_check_branch
      %46 = sbr.rel (0) target = $region17
    $region16: #{tpu_custom_call.1} parent=1 // pred_region
      %47 = dma.done [#allocation8], 256
    $region17: #{tpu_custom_call.1} parent=1 // pred_fallthru
      _
    %s48 = sadd.s32 0, 0
    %s49 = smul.u32 2, %s48
    %s50 = sadd.s32 0, 0
    %s51 = smul.u32 2, %s50
    %p52 = scmp.eq.s32.totalorder 0, 0
    // Predicated region
    $region18: #{tpu_custom_call.1} parent=1 // pred_check
      %p53 = pneg %p52
    $region19: #{tpu_custom_call.1} parent=1 // pred_check_branch
      %55 = sbr.rel (%p53) target = $region21
    $region20: #{tpu_custom_call.1} parent=1 // pred_region
      %56 = vst [vmem:[#allocation2] sm:$0xff] 0.0
      %57 = vst [vmem:[#allocation3] sm:$0xff] 0.0
    $region21: #{tpu_custom_call.1} parent=1 // pred_fallthru
      _
    %v58 = vld [vmem:[#allocation4] sm:$0xff]
    %v59 = vxor.u32 %v58, 2147483648
    %v60 = vmul.f32 %v59, 1.442695
    %v61 = vpow.pop %v60
    %v62 = vadd.f32 %v61, 1.0
    %v63 = vrcp.pop %v62
    %v64 = vmul.f32 1.0, %v63
    %v65 = vld [vmem:[#allocation7] sm:$0xff]
    %v66 = vld [vmem:[#allocation2] sm:$0xff]
    %v67 = vmul.f32 %v64, %v65
    %v68 = vadd.f32 %v67, 0.0
    %v69 = vadd.f32 %v66, %v68
    %70 = vst [vmem:[#allocation2] sm:$0xff] %v69
    %v71 = vld [vmem:[#allocation3] sm:$0xff]
    %v72 = vadd.f32 %v64, %v65
    %v73 = vadd.f32 %v72, 0.0
    %v74 = vadd.f32 %v71, %v73
    %75 = vst [vmem:[#allocation3] sm:$0xff] %v74
    %s76 = scalar_lea.vmem [#allocation4], 8
    %v77 = vld [vmem:[%s76] sm:$0xff]
    %v78 = vxor.u32 %v77, 2147483648
    %v79 = vmul.f32 %v78, 1.442695
    %v80 = vpow.pop %v79
    %v81 = vadd.f32 %v80, 1.0
    %v82 = vrcp.pop %v81
    %v83 = vmul.f32 1.0, %v82
    %s84 = scalar_lea.vmem [#allocation7], 8
    %v85 = vld [vmem:[%s84] sm:$0xff]
    %v86 = vld [vmem:[#allocation2] sm:$0xff]
    %v87 = vmul.f32 %v83, %v85
    %v88 = vadd.f32 %v87, 0.0
    %v89 = vadd.f32 %v86, %v88
    %90 = vst [vmem:[#allocation2] sm:$0xff] %v89
    %v91 = vld [vmem:[#allocation3] sm:$0xff]
    %v92 = vadd.f32 %v83, %v85
    %v93 = vadd.f32 %v92, 0.0
    %v94 = vadd.f32 %v91, %v93
    %95 = vst [vmem:[#allocation3] sm:$0xff] %v94
    // Predicated region
    $region22: #{tpu_custom_call.1} parent=1 // pred_check
      %p96 = pneg %p52
    $region23: #{tpu_custom_call.1} parent=1 // pred_check_branch
      %98 = sbr.rel (%p96) target = $region25
    $region24: #{tpu_custom_call.1} parent=1 // pred_region
      %v99 = vld [vmem:[#allocation2] sm:$0xff]
      %100 = vst [vmem:[#allocation9] sm:$0xff] %v99
      %v101 = vld [vmem:[#allocation3] sm:$0xff]
      %s102 = scalar_lea.vmem [#allocation9], 8
      %103 = vst [vmem:[%s102] sm:$0xff] %v101
    $region25: #{tpu_custom_call.1} parent=1 // pred_fallthru
      _
    // Predicated region
    $region26: #{tpu_custom_call.1} parent=1 // pred_check
      _
    $region27: #{tpu_custom_call.1} parent=1 // pred_check_branch
      %105 = sbr.rel (0) target = $region29
    $region28: #{tpu_custom_call.1} parent=1 // pred_region
      %s107 = ssub.s32 256, 256
      %108 = vsyncadd [#allocation6], %s107
      %s109 = sshll.u32 [#allocation9], 4
      %s110 = int_to_ptr.vmem [resolvable:$true] %s109
      %115 = dma.vmem_to_hbm [thread:$0]  %s110, 256, %s2, [#allocation6], 128, 128, 8
    $region29: #{tpu_custom_call.1} parent=1 // pred_fallthru
      _
    // Predicated region
    $region30: #{tpu_custom_call.1} parent=1 // pred_check
      _
    $region31: #{tpu_custom_call.1} parent=1 // pred_check_branch
      %117 = sbr.rel (0) target = $region33
    $region32: #{tpu_custom_call.1} parent=1 // pred_region
      %118 = dma.done [#allocation6], 256
    $region33: #{tpu_custom_call.1} parent=1 // pred_fallthru
      _
    %119 = vsyncpa [#allocation5], 1
    %120 = vsyncpa [#allocation8], 1
    %121 = vsyncpa [#allocation6], 1

</llo_original>
